<compile_context>
chip_gen: v5e
topology: v5e:2x2
jax: 0.10.0
libtpu: 0.0.40
codegen_flags: <defaults>
</compile_context>

<pallas_src>
import jax
import jax.numpy as jnp
from jax.experimental import pallas as pl
from jax.experimental.pallas import tpu as pltpu

IN_DIM = 512        # feature dim coming out of the (external) encoders
OUT_DIM = 60        # nn.Linear(512, 60)
PAD_OUT = 128       # lane-dense padded output width (multiple of 128)
MAX_TILE_B = 1024   # batch rows per grid step (multiple of 8)
VMEM_LIMIT_BYTES = 32 * 1024 * 1024


def _round_up(x, m):
    return (x + m - 1) // m * m


def prepare_params(w_rgb, b_rgb, w_ir, b_ir):
    """One-time parameter preprocessing (hoisted out of every forward call).

    Converts PyTorch-layout (60, 512) weights to MXU-friendly (512, 128)
    transposed + zero-padded matrices, and biases to zero-padded (1, 128)
    rows, so the kernel always sees lane-dense (K, N) operands.
    """
    def pad_w(w):
        wt = jnp.asarray(w, jnp.float32).T                      # (512, 60)
        return jnp.pad(wt, ((0, 0), (0, PAD_OUT - OUT_DIM)))    # (512, 128)

    def pad_b(b):
        b2 = jnp.asarray(b, jnp.float32).reshape(1, OUT_DIM)
        return jnp.pad(b2, ((0, 0), (0, PAD_OUT - OUT_DIM)))    # (1, 128)

    return pad_w(w_rgb), pad_b(b_rgb), pad_w(w_ir), pad_b(b_ir)


def _classifier_kernel(rgb_ref, ir_ref,
                       w_rgb_ref, b_rgb_ref,
                       w_ir_ref, b_ir_ref,
                       rgb_out_ref, ir_out_ref):
    # Two classifier heads on one batch tile:
    #   (TILE_B, 512) @ (512, 128) + (1, 128) -> lane-dense (TILE_B, 128)
    rgb = jnp.dot(rgb_ref[...], w_rgb_ref[...],
                  preferred_element_type=jnp.float32)
    ir = jnp.dot(ir_ref[...], w_ir_ref[...],
                 preferred_element_type=jnp.float32)
    rgb_out_ref[...] = (rgb + b_rgb_ref[...]).astype(rgb_out_ref.dtype)
    ir_out_ref[...] = (ir + b_ir_ref[...]).astype(ir_out_ref.dtype)


def vipx_classifier(rgb_out, ir_out, params):
    """Pallas implementation of VIPxClassefier.forward (post-encoder part).

    rgb_out, ir_out : (B, 512) float32 -- outputs of encoder1 / encoder2
    params          : result of prepare_params(w_rgb, b_rgb, w_ir, b_ir)
    Returns (rgb_features, ir_features), each (B, 60) float32,
    matching nn.Linear semantics y = x @ W.T + b.
    """
    w_rgb_p, b_rgb_p, w_ir_p, b_ir_p = params
    B = rgb_out.shape[0]

    # Batch tiling: largest tile <= MAX_TILE_B that is a multiple of 8, then
    # zero-pad the batch so the grid divides evenly (padded rows sliced off).
    tile_b = min(MAX_TILE_B, _round_up(B, 8))
    b_pad = _round_up(B, tile_b)
    if b_pad != B:
        pad = ((0, b_pad - B), (0, 0))
        rgb_out = jnp.pad(rgb_out, pad)
        ir_out = jnp.pad(ir_out, pad)
    grid = (b_pad // tile_b,)

    flops = 2 * 2 * b_pad * IN_DIM * PAD_OUT
    bytes_accessed = (2 * b_pad * IN_DIM * 4        # inputs
                      + 2 * IN_DIM * PAD_OUT * 4    # weights (VMEM-resident)
                      + 2 * PAD_OUT * 4             # biases
                      + 2 * b_pad * PAD_OUT * 4)    # outputs

    rgb_full, ir_full = pl.pallas_call(
        _classifier_kernel,
        out_shape=(jax.ShapeDtypeStruct((b_pad, PAD_OUT), jnp.float32),
                   jax.ShapeDtypeStruct((b_pad, PAD_OUT), jnp.float32)),
        grid_spec=pltpu.PrefetchScalarGridSpec(
            num_scalar_prefetch=0,
            grid=grid,
            in_specs=[
                pl.BlockSpec((tile_b, IN_DIM), lambda i: (i, 0)),   # rgb tile
                pl.BlockSpec((tile_b, IN_DIM), lambda i: (i, 0)),   # ir tile
                pl.BlockSpec((IN_DIM, PAD_OUT), lambda i: (0, 0)),  # w_rgb
                pl.BlockSpec((1, PAD_OUT), lambda i: (0, 0)),       # b_rgb
                pl.BlockSpec((IN_DIM, PAD_OUT), lambda i: (0, 0)),  # w_ir
                pl.BlockSpec((1, PAD_OUT), lambda i: (0, 0)),       # b_ir
            ],
            out_specs=[
                pl.BlockSpec((tile_b, PAD_OUT), lambda i: (i, 0)),
                pl.BlockSpec((tile_b, PAD_OUT), lambda i: (i, 0)),
            ],
        ),
        compiler_params=pltpu.CompilerParams(
            dimension_semantics=("parallel",),
            vmem_limit_bytes=VMEM_LIMIT_BYTES),
        cost_estimate=pl.CostEstimate(
            flops=flops, transcendentals=0, bytes_accessed=bytes_accessed),
    )(rgb_out, ir_out, w_rgb_p, b_rgb_p, w_ir_p, b_ir_p)

    # Slice off batch padding and the zero-padded output lanes.
    return rgb_full[:B, :OUT_DIM], ir_full[:B, :OUT_DIM]


def _reference(rgb_out, ir_out, w_rgb, b_rgb, w_ir, b_ir):
    # Pure-JAX reference matching torch.nn.Linear semantics: y = x @ W.T + b
    rgb_features = rgb_out @ w_rgb.T + b_rgb
    ir_features = ir_out @ w_ir.T + b_ir
    return rgb_features, ir_features


if __name__ == "__main__":
    key = jax.random.PRNGKey(0)
    k1, k2, k3, k4, k5, k6 = jax.random.split(key, 6)

    B = 2
    # "image" and "text" after their (identity) encoders: (B, 512) features.
    rgb_out = jax.random.normal(k1, (B, IN_DIM), dtype=jnp.float32)
    ir_out = jax.random.normal(k2, (B, IN_DIM), dtype=jnp.float32)

    # Deterministic parameter init, same shapes / init range as nn.Linear(512, 60)
    bound = 1.0 / (IN_DIM ** 0.5)
    w_rgb = jax.random.uniform(k3, (OUT_DIM, IN_DIM), jnp.float32, -bound, bound)
    b_rgb = jax.random.uniform(k4, (OUT_DIM,), jnp.float32, -bound, bound)
    w_ir = jax.random.uniform(k5, (OUT_DIM, IN_DIM), jnp.float32, -bound, bound)
    b_ir = jax.random.uniform(k6, (OUT_DIM,), jnp.float32, -bound, bound)

    # One-time parameter prep (transpose + pad) -- hoisted out of the forward.
    params = prepare_params(w_rgb, b_rgb, w_ir, b_ir)

    rgb_feat, ir_feat = vipx_classifier(rgb_out, ir_out, params)
    jax.block_until_ready((rgb_feat, ir_feat))

    ref_rgb, ref_ir = _reference(rgb_out, ir_out, w_rgb, b_rgb, w_ir, b_ir)
    assert rgb_feat.shape == (B, OUT_DIM) and ir_feat.shape == (B, OUT_DIM)
    assert jnp.allclose(rgb_feat, ref_rgb, atol=1e-4, rtol=1e-4)
    assert jnp.allclose(ir_feat, ref_ir, atol=1e-4, rtol=1e-4)

    print("KERNEL_OK")
</pallas_src>

<mosaic_0001>
module attributes {stable_mosaic.version = 11 : i64} {
  func.func @_classifier_kernel(%arg0: i32, %arg1: memref<8x512xf32, #tpu.memory_space<vmem>>, %arg2: memref<8x512xf32, #tpu.memory_space<vmem>>, %arg3: memref<512x128xf32, #tpu.memory_space<vmem>>, %arg4: memref<1x128xf32, #tpu.memory_space<vmem>>, %arg5: memref<512x128xf32, #tpu.memory_space<vmem>>, %arg6: memref<1x128xf32, #tpu.memory_space<vmem>>, %arg7: memref<8x128xf32, #tpu.memory_space<vmem>>, %arg8: memref<8x128xf32, #tpu.memory_space<vmem>>) attributes {dimension_semantics = [#tpu.dimension_semantics<parallel>], iteration_bounds = array<i64: 1>, scalar_prefetch = 0 : i64, scratch_operands = 0 : i64, tpu.core_type = #tpu.core_type<tc>, window_params = [{transform_indices = @transform_0, window_bounds = array<i64: 8, 512>}, {transform_indices = @transform_1, window_bounds = array<i64: 8, 512>}, {pipeline_mode = #tpu.pipeline_mode<synchronous>, transform_indices = @transform_2, window_bounds = array<i64: 512, 128>}, {pipeline_mode = #tpu.pipeline_mode<synchronous>, transform_indices = @transform_3, window_bounds = array<i64: 1, 128>}, {pipeline_mode = #tpu.pipeline_mode<synchronous>, transform_indices = @transform_4, window_bounds = array<i64: 512, 128>}, {pipeline_mode = #tpu.pipeline_mode<synchronous>, transform_indices = @transform_5, window_bounds = array<i64: 1, 128>}, {transform_indices = @transform_6, window_bounds = array<i64: 8, 128>}, {transform_indices = @transform_7, window_bounds = array<i64: 8, 128>}]} {
    %c0 = arith.constant 0 : index
    %c0_0 = arith.constant 0 : index
    %0 = vector.load %arg1[%c0, %c0_0] : memref<8x512xf32, #tpu.memory_space<vmem>>, vector<8x512xf32>
    %c0_1 = arith.constant 0 : index
    %c0_2 = arith.constant 0 : index
    %1 = vector.load %arg3[%c0_1, %c0_2] : memref<512x128xf32, #tpu.memory_space<vmem>>, vector<512x128xf32>
    %cst = arith.constant dense<0.000000e+00> : vector<8x128xf32>
    %2 = tpu.matmul %0, %1, %cst {dimension_numbers = #tpu.dot_dimension_numbers<[1], [0], [0], [1], [0, 0, 1, 1], [], []>} : vector<8x512xf32>, vector<512x128xf32>, vector<8x128xf32> -> vector<8x128xf32>
    %c0_3 = arith.constant 0 : index
    %c0_4 = arith.constant 0 : index
    %3 = vector.load %arg2[%c0_3, %c0_4] : memref<8x512xf32, #tpu.memory_space<vmem>>, vector<8x512xf32>
    %c0_5 = arith.constant 0 : index
    %c0_6 = arith.constant 0 : index
    %4 = vector.load %arg5[%c0_5, %c0_6] : memref<512x128xf32, #tpu.memory_space<vmem>>, vector<512x128xf32>
    %cst_7 = arith.constant dense<0.000000e+00> : vector<8x128xf32>
    %5 = tpu.matmul %3, %4, %cst_7 {dimension_numbers = #tpu.dot_dimension_numbers<[1], [0], [0], [1], [0, 0, 1, 1], [], []>} : vector<8x512xf32>, vector<512x128xf32>, vector<8x128xf32> -> vector<8x128xf32>
    %c0_8 = arith.constant 0 : index
    %c0_9 = arith.constant 0 : index
    %6 = vector.load %arg4[%c0_8, %c0_9] : memref<1x128xf32, #tpu.memory_space<vmem>>, vector<1x128xf32>
    %7 = vector.broadcast %6 : vector<1x128xf32> to vector<8x128xf32>
    %8 = arith.addf %2, %7 : vector<8x128xf32>
    %c0_10 = arith.constant 0 : index
    %c0_11 = arith.constant 0 : index
    %9 = vector.load %arg7[%c0_10, %c0_11] : memref<8x128xf32, #tpu.memory_space<vmem>>, vector<8x128xf32>
    tpu.vector_store %arg7[%c0_10, %c0_11], %8 {strides = array<i32>} : memref<8x128xf32, #tpu.memory_space<vmem>>, vector<8x128xf32>,
    %c0_12 = arith.constant 0 : index
    %c0_13 = arith.constant 0 : index
    %10 = vector.load %arg6[%c0_12, %c0_13] : memref<1x128xf32, #tpu.memory_space<vmem>>, vector<1x128xf32>
    %11 = vector.broadcast %10 : vector<1x128xf32> to vector<8x128xf32>
    %12 = arith.addf %5, %11 : vector<8x128xf32>
    %c0_14 = arith.constant 0 : index
    %c0_15 = arith.constant 0 : index
    %13 = vector.load %arg8[%c0_14, %c0_15] : memref<8x128xf32, #tpu.memory_space<vmem>>, vector<8x128xf32>
    tpu.vector_store %arg8[%c0_14, %c0_15], %12 {strides = array<i32>} : memref<8x128xf32, #tpu.memory_space<vmem>>, vector<8x128xf32>,
    return
  }
  func.func @transform_0(%arg0: i32) -> (i32, i32) {
    %c0_i32 = arith.constant 0 : i32
    %c0_i32_0 = arith.constant 0 : i32
    return %arg0, %c0_i32 : i32, i32
  }
  func.func @transform_1(%arg0: i32) -> (i32, i32) {
    %c0_i32 = arith.constant 0 : i32
    %c0_i32_0 = arith.constant 0 : i32
    return %arg0, %c0_i32 : i32, i32
  }
  func.func @transform_2(%arg0: i32) -> (i32, i32) {
    %c0_i32 = arith.constant 0 : i32
    %c0_i32_0 = arith.constant 0 : i32
    %c0_i32_1 = arith.constant 0 : i32
    return %c0_i32, %c0_i32_0 : i32, i32
  }
  func.func @transform_3(%arg0: i32) -> (i32, i32) {
    %c0_i32 = arith.constant 0 : i32
    %c0_i32_0 = arith.constant 0 : i32
    %c0_i32_1 = arith.constant 0 : i32
    return %c0_i32, %c0_i32_0 : i32, i32
  }
  func.func @transform_4(%arg0: i32) -> (i32, i32) {
    %c0_i32 = arith.constant 0 : i32
    %c0_i32_0 = arith.constant 0 : i32
    %c0_i32_1 = arith.constant 0 : i32
    return %c0_i32, %c0_i32_0 : i32, i32
  }
  func.func @transform_5(%arg0: i32) -> (i32, i32) {
    %c0_i32 = arith.constant 0 : i32
    %c0_i32_0 = arith.constant 0 : i32
    %c0_i32_1 = arith.constant 0 : i32
    return %c0_i32, %c0_i32_0 : i32, i32
  }
  func.func @transform_6(%arg0: i32) -> (i32, i32) {
    %c0_i32 = arith.constant 0 : i32
    %c0_i32_0 = arith.constant 0 : i32
    return %arg0, %c0_i32 : i32, i32
  }
  func.func @transform_7(%arg0: i32) -> (i32, i32) {
    %c0_i32 = arith.constant 0 : i32
    %c0_i32_0 = arith.constant 0 : i32
    return %arg0, %c0_i32 : i32, i32
  }
}

</mosaic_0001>

<llo_original>
// kernel: tpu_custom_call.1
$region0: #{tpu_custom_call.1}
  #allocation0 [shape = 'u32[]', space=smem, size = 0x4, offset = 0x4, fixed_abs, tag = 'smem constant byte address 0x4 - core index']
  #allocation1 [shape = 'u32[72,128]{1,0:T(1,128)}', space=vmem, size = 0x9000, scoped, tag = 'internal scratch']
  %s0 = inlined_call_operand.hbm [shape: f32[8,512], index: 0, kind: input, shape index: {}]
  %s1 = inlined_call_operand.hbm [shape: f32[8,512], index: 1, kind: input, shape index: {}]
  %s2 = inlined_call_operand.hbm [shape: f32[512,128], index: 2, kind: input, shape index: {}]
  %s3 = inlined_call_operand.vmem [shape: f32[1,128], index: 3, kind: input, shape index: {}]
  %s4 = inlined_call_operand.hbm [shape: f32[512,128], index: 4, kind: input, shape index: {}]
  %s5 = inlined_call_operand.vmem [shape: f32[1,128], index: 5, kind: input, shape index: {}]
  %s6 = inlined_call_operand.hbm [shape: f32[8,128], index: 6, kind: output, shape index: {0}]
  %s7 = inlined_call_operand.hbm [shape: f32[8,128], index: 7, kind: output, shape index: {1}]
  %8 = xla_tuple %s6, %s7
  %s9 = sld [smem:[#allocation0]]
  $region58: #{tpu_custom_call.1} parent=0
    _
  %s11 = ssub.s32 1, %s9
  %s12 = scalar_select 0, %s11, %s9
  $region1: #{tpu_custom_call.1} parent=0
    #allocation2 [shape = 'u8[16384]{0}', space=vmem, size = 0x4000, scoped, tag = 'input window, operand 0, single buffered']
    #allocation3 [shape = 's32[1]{0}', space=sflag, size = 0x4, scoped, tag = 'scoped memory for tpu_custom_call.1']
    #allocation4 [shape = 's32[1]{0}', space=sflag, size = 0x4, scoped, tag = 'scoped memory for tpu_custom_call.1']
    #allocation5 [shape = 'u8[16384]{0}', space=vmem, size = 0x4000, scoped, tag = 'input window, operand 1, single buffered']
    #allocation6 [shape = 's32[1]{0}', space=sflag, size = 0x4, scoped, tag = 'scoped memory for tpu_custom_call.1']
    #allocation7 [shape = 'u8[262144]{0}', space=vmem, size = 0x40000, scoped, tag = 'input window, operand 2, single buffered']
    #allocation8 [shape = 'u8[262144]{0}', space=vmem, size = 0x40000, scoped, tag = 'input window, operand 4, single buffered']
    #allocation9 [shape = 's32[1]{0}', space=sflag, size = 0x4, scoped, tag = 'scoped memory for tpu_custom_call.1']
    #allocation10 [shape = 'u8[4096]{0}', space=vmem, size = 0x1000, scoped, tag = 'output window, operand 0, single buffered']
    #allocation11 [shape = 'u8[4096]{0}', space=vmem, size = 0x1000, scoped, tag = 'output window, operand 1, single buffered']
    #allocation12 [shape = 's32[1]{0}', space=sflag, size = 0x4, scoped, tag = 'scoped memory for tpu_custom_call.1']
    %13 = vsyncpa [#allocation3], 0
    %14 = vsyncpa [#allocation6], 0
    %15 = vsyncpa [#allocation9], 0
    %16 = vsyncpa [#allocation4], 0
    %17 = vsyncpa [#allocation12], 0
    // Predicated region
    $region2: #{tpu_custom_call.1} parent=1 // pred_check
      _
    $region3: #{tpu_custom_call.1} parent=1 // pred_check_branch
      %19 = sbr.rel (0) target = $region5
    $region4: #{tpu_custom_call.1} parent=1 // pred_region
      %21 = vsyncadd [#allocation3], 0
      %s23 = sshll.u32 %s0, 4
      %s24 = int_to_ptr.hbm [resolvable:$true] %s23
      %s25 = sshll.u32 [#allocation2], 4
      %s26 = int_to_ptr.vmem [resolvable:$true] %s25
      %28 = dma.hbm_to_vmem [thread:$0]  %s24, 512, %s26, [#allocation3]
    $region5: #{tpu_custom_call.1} parent=1 // pred_fallthru
      _
    // Predicated region
    $region6: #{tpu_custom_call.1} parent=1 // pred_check
      _
    $region7: #{tpu_custom_call.1} parent=1 // pred_check_branch
      %30 = sbr.rel (0) target = $region9
    $region8: #{tpu_custom_call.1} parent=1 // pred_region
      %32 = vsyncadd [#allocation6], 0
      %s34 = sshll.u32 %s1, 4
      %s35 = int_to_ptr.hbm [resolvable:$true] %s34
      %s36 = sshll.u32 [#allocation5], 4
      %s37 = int_to_ptr.vmem [resolvable:$true] %s36
      %39 = dma.hbm_to_vmem [thread:$0]  %s35, 512, %s37, [#allocation6]
    $region9: #{tpu_custom_call.1} parent=1 // pred_fallthru
      _
    // Predicated region
    $region10: #{tpu_custom_call.1} parent=1 // pred_check
      _
    $region11: #{tpu_custom_call.1} parent=1 // pred_check_branch
      %41 = sbr.rel (0) target = $region13
    $region12: #{tpu_custom_call.1} parent=1 // pred_region
      %43 = vsyncadd [#allocation6], 0
      %s44 = sshll.u32 %s2, 4
      %s45 = int_to_ptr.hbm [resolvable:$true] %s44
      %s46 = sshll.u32 [#allocation7], 4
      %s47 = int_to_ptr.vmem [resolvable:$true] %s46
      %52 = dma.hbm_to_vmem [thread:$0]  %s45, 8192, %s47, [#allocation6], 128, 128, 8
    $region13: #{tpu_custom_call.1} parent=1 // pred_fallthru
      _
    // Predicated region
    $region14: #{tpu_custom_call.1} parent=1 // pred_check
      _
    $region15: #{tpu_custom_call.1} parent=1 // pred_check_branch
      %54 = sbr.rel (0) target = $region17
    $region16: #{tpu_custom_call.1} parent=1 // pred_region
      _
    $region17: #{tpu_custom_call.1} parent=1 // pred_fallthru
      _
    // Predicated region
    $region18: #{tpu_custom_call.1} parent=1 // pred_check
      _
    $region19: #{tpu_custom_call.1} parent=1 // pred_check_branch
      %56 = sbr.rel (0) target = $region21
    $region20: #{tpu_custom_call.1} parent=1 // pred_region
      %58 = vsyncadd [#allocation9], 0
      %s59 = sshll.u32 %s4, 4
      %s60 = int_to_ptr.hbm [resolvable:$true] %s59
      %s61 = sshll.u32 [#allocation8], 4
      %s62 = int_to_ptr.vmem [resolvable:$true] %s61
      %67 = dma.hbm_to_vmem [thread:$0]  %s60, 8192, %s62, [#allocation9], 128, 128, 8
    $region21: #{tpu_custom_call.1} parent=1 // pred_fallthru
      _
    // Predicated region
    $region22: #{tpu_custom_call.1} parent=1 // pred_check
      _
    $region23: #{tpu_custom_call.1} parent=1 // pred_check_branch
      %69 = sbr.rel (0) target = $region25
    $region24: #{tpu_custom_call.1} parent=1 // pred_region
      _
    $region25: #{tpu_custom_call.1} parent=1 // pred_fallthru
      _
    // Predicated region
    $region26: #{tpu_custom_call.1} parent=1 // pred_check
      _
    $region27: #{tpu_custom_call.1} parent=1 // pred_check_branch
      %71 = sbr.rel (0) target = $region29
    $region28: #{tpu_custom_call.1} parent=1 // pred_region
      %73 = dma.done [#allocation3], 512
    $region29: #{tpu_custom_call.1} parent=1 // pred_fallthru
      _
    // Predicated region
    $region30: #{tpu_custom_call.1} parent=1 // pred_check
      _
    $region31: #{tpu_custom_call.1} parent=1 // pred_check_branch
      %75 = sbr.rel (0) target = $region33
    $region32: #{tpu_custom_call.1} parent=1 // pred_region
      %77 = dma.done [#allocation6], 512
    $region33: #{tpu_custom_call.1} parent=1 // pred_fallthru
      _
    // Predicated region
    $region34: #{tpu_custom_call.1} parent=1 // pred_check
      _
    $region35: #{tpu_custom_call.1} parent=1 // pred_check_branch
      %79 = sbr.rel (0) target = $region37
    $region36: #{tpu_custom_call.1} parent=1 // pred_region
      %81 = dma.done [#allocation6], 8192
    $region37: #{tpu_custom_call.1} parent=1 // pred_fallthru
      _
    // Predicated region
    $region38: #{tpu_custom_call.1} parent=1 // pred_check
      _
    $region39: #{tpu_custom_call.1} parent=1 // pred_check_branch
      %83 = sbr.rel (0) target = $region41
    $region40: #{tpu_custom_call.1} parent=1 // pred_region
      %85 = dma.done [#allocation9], 8192
    $region41: #{tpu_custom_call.1} parent=1 // pred_fallthru
      _
    %v86 = vld [vmem:[#allocation2] sm:$0xff]
    %v87 = vld [vmem:[#allocation2 + $0x8] sm:$0xff]
    %v88 = vld [vmem:[#allocation2 + $0x10] sm:$0xff]
    %v89 = vld [vmem:[#allocation2 + $0x18] sm:$0xff]
    %v90 = vld [vmem:[#allocation7] sm:$0xff]
    %v91 = vld [vmem:[#allocation7 + $0x8] sm:$0xff]
    %v92 = vld [vmem:[#allocation7 + $0x10] sm:$0xff]
    %v93 = vld [vmem:[#allocation7 + $0x18] sm:$0xff]
    %v94 = vld [vmem:[#allocation7 + $0x20] sm:$0xff]
    %v95 = vld [vmem:[#allocation7 + $0x28] sm:$0xff]
    %v96 = vld [vmem:[#allocation7 + $0x30] sm:$0xff]
    %v97 = vld [vmem:[#allocation7 + $0x38] sm:$0xff]
    %v98 = vld [vmem:[#allocation7 + $0x40] sm:$0xff]
    %v99 = vld [vmem:[#allocation7 + $0x48] sm:$0xff]
    %v100 = vld [vmem:[#allocation7 + $0x50] sm:$0xff]
    %v101 = vld [vmem:[#allocation7 + $0x58] sm:$0xff]
    %v102 = vld [vmem:[#allocation7 + $0x60] sm:$0xff]
    %v103 = vld [vmem:[#allocation7 + $0x68] sm:$0xff]
    %v104 = vld [vmem:[#allocation7 + $0x70] sm:$0xff]
    %v105 = vld [vmem:[#allocation7 + $0x78] sm:$0xff]
    %v106 = vld [vmem:[#allocation7 + $0x80] sm:$0xff]
    %v107 = vld [vmem:[#allocation7 + $0x88] sm:$0xff]
    %v108 = vld [vmem:[#allocation7 + $0x90] sm:$0xff]
    %v109 = vld [vmem:[#allocation7 + $0x98] sm:$0xff]
    %v110 = vld [vmem:[#allocation7 + $0xa0] sm:$0xff]
    %v111 = vld [vmem:[#allocation7 + $0xa8] sm:$0xff]
    %v112 = vld [vmem:[#allocation7 + $0xb0] sm:$0xff]
    %v113 = vld [vmem:[#allocation7 + $0xb8] sm:$0xff]
    %v114 = vld [vmem:[#allocation7 + $0xc0] sm:$0xff]
    %v115 = vld [vmem:[#allocation7 + $0xc8] sm:$0xff]
    %v116 = vld [vmem:[#allocation7 + $0xd0] sm:$0xff]
    %v117 = vld [vmem:[#allocation7 + $0xd8] sm:$0xff]
    %v118 = vld [vmem:[#allocation7 + $0xe0] sm:$0xff]
    %v119 = vld [vmem:[#allocation7 + $0xe8] sm:$0xff]
    %v120 = vld [vmem:[#allocation7 + $0xf0] sm:$0xff]
    %v121 = vld [vmem:[#allocation7 + $0xf8] sm:$0xff]
    %v122 = vld [vmem:[#allocation7 + $0x100] sm:$0xff]
    %v123 = vld [vmem:[#allocation7 + $0x108] sm:$0xff]
    %v124 = vld [vmem:[#allocation7 + $0x110] sm:$0xff]
    %v125 = vld [vmem:[#allocation7 + $0x118] sm:$0xff]
    %v126 = vld [vmem:[#allocation7 + $0x120] sm:$0xff]
    %v127 = vld [vmem:[#allocation7 + $0x128] sm:$0xff]
    %v128 = vld [vmem:[#allocation7 + $0x130] sm:$0xff]
    %v129 = vld [vmem:[#allocation7 + $0x138] sm:$0xff]
    %v130 = vld [vmem:[#allocation7 + $0x140] sm:$0xff]
    %v131 = vld [vmem:[#allocation7 + $0x148] sm:$0xff]
    %v132 = vld [vmem:[#allocation7 + $0x150] sm:$0xff]
    %v133 = vld [vmem:[#allocation7 + $0x158] sm:$0xff]
    %v134 = vld [vmem:[#allocation7 + $0x160] sm:$0xff]
    %v135 = vld [vmem:[#allocation7 + $0x168] sm:$0xff]
    %v136 = vld [vmem:[#allocation7 + $0x170] sm:$0xff]
    %v137 = vld [vmem:[#allocation7 + $0x178] sm:$0xff]
    %v138 = vld [vmem:[#allocation7 + $0x180] sm:$0xff]
    %v139 = vld [vmem:[#allocation7 + $0x188] sm:$0xff]
    %v140 = vld [vmem:[#allocation7 + $0x190] sm:$0xff]
    %v141 = vld [vmem:[#allocation7 + $0x198] sm:$0xff]
    %v142 = vld [vmem:[#allocation7 + $0x1a0] sm:$0xff]
    %v143 = vld [vmem:[#allocation7 + $0x1a8] sm:$0xff]
    %v144 = vld [vmem:[#allocation7 + $0x1b0] sm:$0xff]
    %v145 = vld [vmem:[#allocation7 + $0x1b8] sm:$0xff]
    %v146 = vld [vmem:[#allocation7 + $0x1c0] sm:$0xff]
    %v147 = vld [vmem:[#allocation7 + $0x1c8] sm:$0xff]
    %v148 = vld [vmem:[#allocation7 + $0x1d0] sm:$0xff]
    %v149 = vld [vmem:[#allocation7 + $0x1d8] sm:$0xff]
    %v150 = vld [vmem:[#allocation7 + $0x1e0] sm:$0xff]
    %v151 = vld [vmem:[#allocation7 + $0x1e8] sm:$0xff]
    %v152 = vld [vmem:[#allocation7 + $0x1f0] sm:$0xff]
    %v153 = vld [vmem:[#allocation7 + $0x1f8] sm:$0xff]
    %v154 = vld [vmem:[#allocation5] sm:$0xff]
    %v155 = vld [vmem:[#allocation5 + $0x8] sm:$0xff]
    %v156 = vld [vmem:[#allocation5 + $0x10] sm:$0xff]
    %v157 = vld [vmem:[#allocation5 + $0x18] sm:$0xff]
    %v158 = vld [vmem:[#allocation8] sm:$0xff]
    %v159 = vld [vmem:[#allocation8 + $0x8] sm:$0xff]
    %v160 = vld [vmem:[#allocation8 + $0x10] sm:$0xff]
    %v161 = vld [vmem:[#allocation8 + $0x18] sm:$0xff]
    %v162 = vld [vmem:[#allocation8 + $0x20] sm:$0xff]
    %v163 = vld [vmem:[#allocation8 + $0x28] sm:$0xff]
    %v164 = vld [vmem:[#allocation8 + $0x30] sm:$0xff]
    %v165 = vld [vmem:[#allocation8 + $0x38] sm:$0xff]
    %v166 = vld [vmem:[#allocation8 + $0x40] sm:$0xff]
    %v167 = vld [vmem:[#allocation8 + $0x48] sm:$0xff]
    %v168 = vld [vmem:[#allocation8 + $0x50] sm:$0xff]
    %v169 = vld [vmem:[#allocation8 + $0x58] sm:$0xff]
    %v170 = vld [vmem:[#allocation8 + $0x60] sm:$0xff]
    %v171 = vld [vmem:[#allocation8 + $0x68] sm:$0xff]
    %v172 = vld [vmem:[#allocation8 + $0x70] sm:$0xff]
    %v173 = vld [vmem:[#allocation8 + $0x78] sm:$0xff]
    %v174 = vld [vmem:[#allocation8 + $0x80] sm:$0xff]
    %v175 = vld [vmem:[#allocation8 + $0x88] sm:$0xff]
    %v176 = vld [vmem:[#allocation8 + $0x90] sm:$0xff]
    %v177 = vld [vmem:[#allocation8 + $0x98] sm:$0xff]
    %v178 = vld [vmem:[#allocation8 + $0xa0] sm:$0xff]
    %v179 = vld [vmem:[#allocation8 + $0xa8] sm:$0xff]
    %v180 = vld [vmem:[#allocation8 + $0xb0] sm:$0xff]
    %v181 = vld [vmem:[#allocation8 + $0xb8] sm:$0xff]
    %v182 = vld [vmem:[#allocation8 + $0xc0] sm:$0xff]
    %v183 = vld [vmem:[#allocation8 + $0xc8] sm:$0xff]
    %v184 = vld [vmem:[#allocation8 + $0xd0] sm:$0xff]
    %v185 = vld [vmem:[#allocation8 + $0xd8] sm:$0xff]
    %v186 = vld [vmem:[#allocation8 + $0xe0] sm:$0xff]
    %v187 = vld [vmem:[#allocation8 + $0xe8] sm:$0xff]
    %v188 = vld [vmem:[#allocation8 + $0xf0] sm:$0xff]
    %v189 = vld [vmem:[#allocation8 + $0xf8] sm:$0xff]
    %v190 = vld [vmem:[#allocation8 + $0x100] sm:$0xff]
    %v191 = vld [vmem:[#allocation8 + $0x108] sm:$0xff]
    %v192 = vld [vmem:[#allocation8 + $0x110] sm:$0xff]
    %v193 = vld [vmem:[#allocation8 + $0x118] sm:$0xff]
    %v194 = vld [vmem:[#allocation8 + $0x120] sm:$0xff]
    %v195 = vld [vmem:[#allocation8 + $0x128] sm:$0xff]
    %v196 = vld [vmem:[#allocation8 + $0x130] sm:$0xff]
    %v197 = vld [vmem:[#allocation8 + $0x138] sm:$0xff]
    %v198 = vld [vmem:[#allocation8 + $0x140] sm:$0xff]
    %v199 = vld [vmem:[#allocation8 + $0x148] sm:$0xff]
    %v200 = vld [vmem:[#allocation8 + $0x150] sm:$0xff]
    %v201 = vld [vmem:[#allocation8 + $0x158] sm:$0xff]
    %v202 = vld [vmem:[#allocation8 + $0x160] sm:$0xff]
    %v203 = vld [vmem:[#allocation8 + $0x168] sm:$0xff]
    %v204 = vld [vmem:[#allocation8 + $0x170] sm:$0xff]
    %v205 = vld [vmem:[#allocation8 + $0x178] sm:$0xff]
    %v206 = vld [vmem:[#allocation8 + $0x180] sm:$0xff]
    %v207 = vld [vmem:[#allocation8 + $0x188] sm:$0xff]
    %v208 = vld [vmem:[#allocation8 + $0x190] sm:$0xff]
    %v209 = vld [vmem:[#allocation8 + $0x198] sm:$0xff]
    %v210 = vld [vmem:[#allocation8 + $0x1a0] sm:$0xff]
    %v211 = vld [vmem:[#allocation8 + $0x1a8] sm:$0xff]
    %v212 = vld [vmem:[#allocation8 + $0x1b0] sm:$0xff]
    %v213 = vld [vmem:[#allocation8 + $0x1b8] sm:$0xff]
    %v214 = vld [vmem:[#allocation8 + $0x1c0] sm:$0xff]
    %v215 = vld [vmem:[#allocation8 + $0x1c8] sm:$0xff]
    %v216 = vld [vmem:[#allocation8 + $0x1d0] sm:$0xff]
    %v217 = vld [vmem:[#allocation8 + $0x1d8] sm:$0xff]
    %v218 = vld [vmem:[#allocation8 + $0x1e0] sm:$0xff]
    %v219 = vld [vmem:[#allocation8 + $0x1e8] sm:$0xff]
    %v220 = vld [vmem:[#allocation8 + $0x1f0] sm:$0xff]
    %v221 = vld [vmem:[#allocation8 + $0x1f8] sm:$0xff]
    %v222 = vld [vmem:[%s3] sm:$0x1]
    %v224 = vperm.slane %v222, 0
    %226 = vmatpush.msra.mxu0 %v105
    %227 = vmatpush.msra.mxu0 %v104
    %228 = vmatpush.msra.mxu0 %v103
    %229 = vmatpush.msra.mxu0 %v102
    %230 = vmatpush.msra.mxu0 %v101
    %231 = vmatpush.msra.mxu0 %v100
    %232 = vmatpush.msra.mxu0 %v99
    %233 = vmatpush.msra.mxu0 %v98
    %234 = vmatpush.msra.mxu0 %v97
    %235 = vmatpush.msra.mxu0 %v96
    %236 = vmatpush.msra.mxu0 %v95
    %237 = vmatpush.msra.mxu0 %v94
    %238 = vmatpush.msra.mxu0 %v93
    %239 = vmatpush.msra.mxu0 %v92
    %240 = vmatpush.msra.mxu0 %v91
    %241 = vmatpush.msra.mxu0 %v90
    %242 = vmatmul.f32.gmra.mxu0 %v86
    %v243 = vpop.f32.mrf.mxu0
    %v244 = vadd.f32 %v224, %v243
    %245 = vdwg.mxu0
    %246 = vmatpush.msra.mxu0 %v121
    %247 = vmatpush.msra.mxu0 %v120
    %248 = vmatpush.msra.mxu0 %v119
    %249 = vmatpush.msra.mxu0 %v118
    %250 = vmatpush.msra.mxu0 %v117
    %251 = vmatpush.msra.mxu0 %v116
    %252 = vmatpush.msra.mxu0 %v115
    %253 = vmatpush.msra.mxu0 %v114
    %254 = vmatpush.msra.mxu0 %v113
    %255 = vmatpush.msra.mxu0 %v112
    %256 = vmatpush.msra.mxu0 %v111
    %257 = vmatpush.msra.mxu0 %v110
    %258 = vmatpush.msra.mxu0 %v109
    %259 = vmatpush.msra.mxu0 %v108
    %260 = vmatpush.msra.mxu0 %v107
    %261 = vmatpush.msra.mxu0 %v106
    %262 = vmatmul.f32.gmra.mxu0 %v87
    %v263 = vpop.f32.mrf.mxu0
    %v264 = vadd.f32 %v244, %v263
    %265 = vdwg.mxu0
    %266 = vmatpush.msra.mxu0 %v137
    %267 = vmatpush.msra.mxu0 %v136
    %268 = vmatpush.msra.mxu0 %v135
    %269 = vmatpush.msra.mxu0 %v134
    %270 = vmatpush.msra.mxu0 %v133
    %271 = vmatpush.msra.mxu0 %v132
    %272 = vmatpush.msra.mxu0 %v131
    %273 = vmatpush.msra.mxu0 %v130
    %274 = vmatpush.msra.mxu0 %v129
    %275 = vmatpush.msra.mxu0 %v128
    %276 = vmatpush.msra.mxu0 %v127
    %277 = vmatpush.msra.mxu0 %v126
    %278 = vmatpush.msra.mxu0 %v125
    %279 = vmatpush.msra.mxu0 %v124
    %280 = vmatpush.msra.mxu0 %v123
    %281 = vmatpush.msra.mxu0 %v122
    %282 = vmatmul.f32.gmra.mxu0 %v88
    %v283 = vpop.f32.mrf.mxu0
    %v284 = vadd.f32 %v264, %v283
    %285 = vdwg.mxu0
    %286 = vmatpush.msra.mxu0 %v153
    %287 = vmatpush.msra.mxu0 %v152
    %288 = vmatpush.msra.mxu0 %v151
    %289 = vmatpush.msra.mxu0 %v150
    %290 = vmatpush.msra.mxu0 %v149
    %291 = vmatpush.msra.mxu0 %v148
    %292 = vmatpush.msra.mxu0 %v147
    %293 = vmatpush.msra.mxu0 %v146
    %294 = vmatpush.msra.mxu0 %v145
    %295 = vmatpush.msra.mxu0 %v144
    %296 = vmatpush.msra.mxu0 %v143
    %297 = vmatpush.msra.mxu0 %v142
    %298 = vmatpush.msra.mxu0 %v141
    %299 = vmatpush.msra.mxu0 %v140
    %300 = vmatpush.msra.mxu0 %v139
    %301 = vmatpush.msra.mxu0 %v138
    %302 = vmatmul.f32.gmra.mxu0 %v89
    %v303 = vpop.f32.mrf.mxu0
    %v304 = vadd.f32 %v284, %v303
    %305 = vdwg.mxu0
    %306 = vst [vmem:[#allocation10] sm:$0xff] %v304
    %v307 = vld [vmem:[%s5] sm:$0x1]
    %v309 = vperm.slane %v307, 0
    %311 = vmatpush.msra.mxu0 %v173
    %312 = vmatpush.msra.mxu0 %v172
    %313 = vmatpush.msra.mxu0 %v171
    %314 = vmatpush.msra.mxu0 %v170
    %315 = vmatpush.msra.mxu0 %v169
    %316 = vmatpush.msra.mxu0 %v168
    %317 = vmatpush.msra.mxu0 %v167
    %318 = vmatpush.msra.mxu0 %v166
    %319 = vmatpush.msra.mxu0 %v165
    %320 = vmatpush.msra.mxu0 %v164
    %321 = vmatpush.msra.mxu0 %v163
    %322 = vmatpush.msra.mxu0 %v162
    %323 = vmatpush.msra.mxu0 %v161
    %324 = vmatpush.msra.mxu0 %v160
    %325 = vmatpush.msra.mxu0 %v159
    %326 = vmatpush.msra.mxu0 %v158
    %327 = vmatmul.f32.gmra.mxu0 %v154
    %v328 = vpop.f32.mrf.mxu0
    %v329 = vadd.f32 %v309, %v328
    %330 = vdwg.mxu0
    %331 = vmatpush.msra.mxu0 %v189
    %332 = vmatpush.msra.mxu0 %v188
    %333 = vmatpush.msra.mxu0 %v187
    %334 = vmatpush.msra.mxu0 %v186
    %335 = vmatpush.msra.mxu0 %v185
    %336 = vmatpush.msra.mxu0 %v184
    %337 = vmatpush.msra.mxu0 %v183
    %338 = vmatpush.msra.mxu0 %v182
    %339 = vmatpush.msra.mxu0 %v181
    %340 = vmatpush.msra.mxu0 %v180
    %341 = vmatpush.msra.mxu0 %v179
    %342 = vmatpush.msra.mxu0 %v178
    %343 = vmatpush.msra.mxu0 %v177
    %344 = vmatpush.msra.mxu0 %v176
    %345 = vmatpush.msra.mxu0 %v175
    %346 = vmatpush.msra.mxu0 %v174
    %347 = vmatmul.f32.gmra.mxu0 %v155
    %v348 = vpop.f32.mrf.mxu0
    %v349 = vadd.f32 %v329, %v348
    %350 = vdwg.mxu0
    %351 = vmatpush.msra.mxu0 %v205
    %352 = vmatpush.msra.mxu0 %v204
    %353 = vmatpush.msra.mxu0 %v203
    %354 = vmatpush.msra.mxu0 %v202
    %355 = vmatpush.msra.mxu0 %v201
    %356 = vmatpush.msra.mxu0 %v200
    %357 = vmatpush.msra.mxu0 %v199
    %358 = vmatpush.msra.mxu0 %v198
    %359 = vmatpush.msra.mxu0 %v197
    %360 = vmatpush.msra.mxu0 %v196
    %361 = vmatpush.msra.mxu0 %v195
    %362 = vmatpush.msra.mxu0 %v194
    %363 = vmatpush.msra.mxu0 %v193
    %364 = vmatpush.msra.mxu0 %v192
    %365 = vmatpush.msra.mxu0 %v191
    %366 = vmatpush.msra.mxu0 %v190
    %367 = vmatmul.f32.gmra.mxu0 %v156
    %v368 = vpop.f32.mrf.mxu0
    %v369 = vadd.f32 %v349, %v368
    %370 = vdwg.mxu0
    %371 = vmatpush.msra.mxu0 %v221
    %372 = vmatpush.msra.mxu0 %v220
    %373 = vmatpush.msra.mxu0 %v219
    %374 = vmatpush.msra.mxu0 %v218
    %375 = vmatpush.msra.mxu0 %v217
    %376 = vmatpush.msra.mxu0 %v216
    %377 = vmatpush.msra.mxu0 %v215
    %378 = vmatpush.msra.mxu0 %v214
    %379 = vmatpush.msra.mxu0 %v213
    %380 = vmatpush.msra.mxu0 %v212
    %381 = vmatpush.msra.mxu0 %v211
    %382 = vmatpush.msra.mxu0 %v210
    %383 = vmatpush.msra.mxu0 %v209
    %384 = vmatpush.msra.mxu0 %v208
    %385 = vmatpush.msra.mxu0 %v207
    %386 = vmatpush.msra.mxu0 %v206
    %387 = vmatmul.f32.gmra.mxu0 %v157
    %v388 = vpop.f32.mrf.mxu0
    %v389 = vadd.f32 %v369, %v388
    %390 = vdwg.mxu0
    %391 = vst [vmem:[#allocation11] sm:$0xff] %v389
    // Predicated region
    $region42: #{tpu_custom_call.1} parent=1 // pred_check
      _
    $region43: #{tpu_custom_call.1} parent=1 // pred_check_branch
      %393 = sbr.rel (0) target = $region45
    $region44: #{tpu_custom_call.1} parent=1 // pred_region
      %395 = vsyncadd [#allocation4], 0
      %s397 = sshll.u32 [#allocation10], 4
      %s398 = int_to_ptr.vmem [resolvable:$true] %s397
      %s399 = sshll.u32 %s6, 4
      %s400 = int_to_ptr.hbm [resolvable:$true] %s399
      %402 = dma.vmem_to_hbm [thread:$0]  %s398, 128, %s400, [#allocation4]
    $region45: #{tpu_custom_call.1} parent=1 // pred_fallthru
      _
    // Predicated region
    $region46: #{tpu_custom_call.1} parent=1 // pred_check
      _
    $region47: #{tpu_custom_call.1} parent=1 // pred_check_branch
      %404 = sbr.rel (0) target = $region49
    $region48: #{tpu_custom_call.1} parent=1 // pred_region
      %406 = vsyncadd [#allocation12], 0
      %s408 = sshll.u32 [#allocation11], 4
      %s409 = int_to_ptr.vmem [resolvable:$true] %s408
      %s410 = sshll.u32 %s7, 4
      %s411 = int_to_ptr.hbm [resolvable:$true] %s410
      %413 = dma.vmem_to_hbm [thread:$0]  %s409, 128, %s411, [#allocation12]
    $region49: #{tpu_custom_call.1} parent=1 // pred_fallthru
      _
    // Predicated region
    $region50: #{tpu_custom_call.1} parent=1 // pred_check
      _
    $region51: #{tpu_custom_call.1} parent=1 // pred_check_branch
      %415 = sbr.rel (0) target = $region53
    $region52: #{tpu_custom_call.1} parent=1 // pred_region
      %417 = dma.done [#allocation4], 128
    $region53: #{tpu_custom_call.1} parent=1 // pred_fallthru
      _
    // Predicated region
    $region54: #{tpu_custom_call.1} parent=1 // pred_check
      _
    $region55: #{tpu_custom_call.1} parent=1 // pred_check_branch
      %419 = sbr.rel (0) target = $region57
    $region56: #{tpu_custom_call.1} parent=1 // pred_region
      %421 = dma.done [#allocation12], 128
    $region57: #{tpu_custom_call.1} parent=1 // pred_fallthru
      _
    %422 = vsyncpa [#allocation3], 1
    %423 = vsyncpa [#allocation6], 1
    %424 = vsyncpa [#allocation9], 1
    %425 = vsyncpa [#allocation4], 1
    %426 = vsyncpa [#allocation12], 1

</llo_original>
